<compile_context>
chip_gen: v6e
topology: v6e:2x2x1
jax: 0.10.0
libtpu: 0.0.40
codegen_flags: <defaults>
</compile_context>

<pallas_src>
import jax
import jax.numpy as jnp
from jax.experimental import pallas as pl
from jax.experimental.pallas import tpu as pltpu


def _reph_kernel(node_ref, feat_ref, agg_ref,
                 w1a_ref, w1b_ref, b1_ref, g1_ref, be1_ref,
                 w2_ref, b2_ref, g2_ref, be2_ref,
                 w3r_ref, b3_ref,
                 out_ref):
    eps = 1e-5

    # ---- scatter_mean message (independent of the node index b) -------------------
    # agg[f, j] = multiplicity of feature j in feature f's neighbor set (incl. self).
    agg = agg_ref[...]                                              # [F, F]
    deg = jnp.sum(agg, axis=-1, keepdims=True)                      # [F, 1], >= 1
    msg = jnp.dot(agg, feat_ref[...],
                  preferred_element_type=jnp.float32) / deg         # [F, D]

    # ---- layer 1: split matmul (concat == outer sum of two factors) ---------------
    na1 = jnp.dot(node_ref[...], w1a_ref[...],
                  preferred_element_type=jnp.float32)               # [bs, h1]
    mb1 = jnp.dot(msg, w1b_ref[...],
                  preferred_element_type=jnp.float32) + b1_ref[...] # [F, h1]

    # BatchNorm1d(h1): stats over all bs*F rows, computed separably.
    #   mean = mean_b(na1) + mean_f(mb1);  var = var_b(na1) + var_f(mb1)  (cross term = 0)
    mu_a = jnp.mean(na1, axis=0, keepdims=True)
    mu_b = jnp.mean(mb1, axis=0, keepdims=True)
    var_a = jnp.mean(na1 * na1, axis=0, keepdims=True) - mu_a * mu_a
    var_b = jnp.mean(mb1 * mb1, axis=0, keepdims=True) - mu_b * mu_b
    s1 = jax.lax.rsqrt(var_a + var_b + eps) * g1_ref[...]
    na1p = na1 * s1                                                 # node factor
    mb1p = (mb1 - (mu_a + mu_b)) * s1 + be1_ref[...]                # feature factor

    # ---- layer 2 --------------------------------------------------------------------
    na2 = jnp.dot(na1p, w2_ref[...], preferred_element_type=jnp.float32)               # [bs, h2]
    mb2 = jnp.dot(mb1p, w2_ref[...], preferred_element_type=jnp.float32) + b2_ref[...] # [F, h2]

    mu_a2 = jnp.mean(na2, axis=0, keepdims=True)
    mu_b2 = jnp.mean(mb2, axis=0, keepdims=True)
    var_a2 = jnp.mean(na2 * na2, axis=0, keepdims=True) - mu_a2 * mu_a2
    var_b2 = jnp.mean(mb2 * mb2, axis=0, keepdims=True) - mu_b2 * mu_b2
    s2 = jax.lax.rsqrt(var_a2 + var_b2 + eps) * g2_ref[...]
    na2p = na2 * s2
    mb2p = (mb2 - (mu_a2 + mu_b2)) * s2 + be2_ref[...]

    # ---- layer 3 (output width 1): VPU reductions + lane-dense [bs, F] store ---------
    w3r = w3r_ref[...]                                              # [1, h2]
    oa = jnp.sum(na2p * w3r, axis=-1, keepdims=True)                # [bs, 1]
    ob = jnp.dot(w3r, mb2p.T, preferred_element_type=jnp.float32)   # [1, F]
    out_ref[...] = oa + ob + b3_ref[...]                            # [bs, F]


def relational_edge_prediction_head(node_emb, feature_emb, relation_index, params,
                                    num_features):
    bs, D = node_emb.shape
    F = num_features
    assert D // 4 > 1, "only the deep decode branch (node_emb_size >= 8) is implemented"
    h1, h2 = D // 2, D // 4

    # Glue: the host-side get_neighbors() loop becomes a dense neighbor-count matrix
    # built with a JAX scatter (data-dependent, done outside the kernel).
    src_r = relation_index[0]
    dst_r = relation_index[1]
    agg = jnp.eye(F, dtype=jnp.float32).at[src_r, dst_r].add(1.0)   # [F, F]

    w1 = params["w1"]
    inputs = (node_emb.astype(jnp.float32), feature_emb.astype(jnp.float32), agg,
              w1[:D], w1[D:], params["b1"], params["g1"], params["be1"],
              params["w2"], params["b2"], params["g2"], params["be2"],
              params["w3"].T, params["b3"])

    flops = 2 * (F * F * D + bs * D * h1 + F * D * h1
                 + bs * h1 * h2 + F * h1 * h2 + (bs + F) * h2)
    bytes_accessed = sum(int(x.size) * 4 for x in inputs) + bs * F * 4

    out = pl.pallas_call(
        _reph_kernel,
        out_shape=jax.ShapeDtypeStruct((bs, F), jnp.float32),
        in_specs=[pl.BlockSpec(memory_space=pltpu.MemorySpace.VMEM)] * len(inputs),
        out_specs=pl.BlockSpec(memory_space=pltpu.MemorySpace.VMEM),
        compiler_params=pltpu.CompilerParams(vmem_limit_bytes=16 * 1024 * 1024),
        cost_estimate=pl.CostEstimate(flops=int(flops),
                                      transcendentals=int(2 * (h1 + h2) + F),
                                      bytes_accessed=int(bytes_accessed)),
    )(*inputs)
    return out


def reference(node_emb, feature_emb, relation_index, params, num_features):
    # Pure-JAX reference mirroring torch semantics: materializes the full [bs*F, 2D]
    # concat and runs training-mode BatchNorm over all bs*F rows.
    F = num_features
    bs, D = node_emb.shape
    src_r, dst_r = relation_index[0], relation_index[1]
    agg = jnp.eye(F, dtype=jnp.float32).at[src_r, dst_r].add(1.0)
    msg_f = (agg @ feature_emb) / agg.sum(-1, keepdims=True)        # scatter_mean

    src = jnp.repeat(jnp.arange(bs), F)                             # repeat_interleave
    dst = jnp.tile(jnp.arange(F), bs)                               # repeat
    cat = jnp.concatenate([node_emb[src], msg_f[dst]], axis=-1)     # [bs*F, 2D]

    def bn(z, g, b):
        mu = z.mean(0, keepdims=True)
        var = ((z - mu) ** 2).mean(0, keepdims=True)
        return (z - mu) / jnp.sqrt(var + 1e-5) * g + b

    z1 = bn(cat @ params["w1"] + params["b1"], params["g1"], params["be1"])
    z2 = bn(z1 @ params["w2"] + params["b2"], params["g2"], params["be2"])
    out = z2 @ params["w3"] + params["b3"]
    return out.reshape(bs, F)


if __name__ == "__main__":
    bs = 2
    node_emb_size = 32          # D  (deep decode branch: D//4 = 8 > 1)
    num_features = 8            # F
    h1_dim = node_emb_size // 2  # 16
    h2_dim = node_emb_size // 4  # 8
    in_channels = 2 * node_emb_size  # 64

    key = jax.random.PRNGKey(0)
    ks = jax.random.split(key, 16)

    node_emb = jax.random.normal(ks[0], (bs, node_emb_size), jnp.float32)
    feature_emb = jax.random.normal(ks[1], (num_features, node_emb_size), jnp.float32)

    # relation_index [2, E]: each feature j has edges to (j+1)%F and (j+2)%F
    f_idx = jnp.arange(num_features)
    src_e = jnp.concatenate([f_idx, f_idx])
    dst_e = jnp.concatenate([(f_idx + 1) % num_features, (f_idx + 2) % num_features])
    relation_index = jnp.stack([src_e, dst_e]).astype(jnp.int32)    # [2, 16]

    params = {
        "w1":  0.1 * jax.random.normal(ks[2], (in_channels, h1_dim), jnp.float32),
        "b1":  0.05 * jax.random.normal(ks[3], (1, h1_dim), jnp.float32),
        "g1":  1.0 + 0.05 * jax.random.normal(ks[4], (1, h1_dim), jnp.float32),
        "be1": 0.05 * jax.random.normal(ks[5], (1, h1_dim), jnp.float32),
        "w2":  0.1 * jax.random.normal(ks[6], (h1_dim, h2_dim), jnp.float32),
        "b2":  0.05 * jax.random.normal(ks[7], (1, h2_dim), jnp.float32),
        "g2":  1.0 + 0.05 * jax.random.normal(ks[8], (1, h2_dim), jnp.float32),
        "be2": 0.05 * jax.random.normal(ks[9], (1, h2_dim), jnp.float32),
        "w3":  0.1 * jax.random.normal(ks[10], (h2_dim, 1), jnp.float32),
        "b3":  0.05 * jax.random.normal(ks[11], (1, 1), jnp.float32),
    }

    out = relational_edge_prediction_head(node_emb, feature_emb, relation_index,
                                          params, num_features)
    out = jax.block_until_ready(out)

    ref = jax.block_until_ready(
        reference(node_emb, feature_emb, relation_index, params, num_features))
    assert out.shape == (bs, num_features)
    assert jnp.allclose(out, ref, atol=1e-3, rtol=1e-3), (out, ref)
    print("KERNEL_OK")
</pallas_src>

<mosaic_0001>
module attributes {stable_mosaic.version = 11 : i64} {
  func.func @_reph_kernel(%arg0: memref<2x32xf32, #tpu.memory_space<vmem>>, %arg1: memref<8x32xf32, #tpu.memory_space<vmem>>, %arg2: memref<8x8xf32, #tpu.memory_space<vmem>>, %arg3: memref<32x16xf32, #tpu.memory_space<vmem>>, %arg4: memref<32x16xf32, #tpu.memory_space<vmem>>, %arg5: memref<1x16xf32, #tpu.memory_space<vmem>>, %arg6: memref<1x16xf32, #tpu.memory_space<vmem>>, %arg7: memref<1x16xf32, #tpu.memory_space<vmem>>, %arg8: memref<16x8xf32, #tpu.memory_space<vmem>>, %arg9: memref<1x8xf32, #tpu.memory_space<vmem>>, %arg10: memref<1x8xf32, #tpu.memory_space<vmem>>, %arg11: memref<1x8xf32, #tpu.memory_space<vmem>>, %arg12: memref<1x8xf32, #tpu.memory_space<vmem>>, %arg13: memref<1x1xf32, #tpu.memory_space<vmem>>, %arg14: memref<2x8xf32, #tpu.memory_space<vmem>>) attributes {dimension_semantics = [], scalar_prefetch = 0 : i64, scratch_operands = 0 : i64, tpu.core_type = #tpu.core_type<tc>} {
    %c0 = arith.constant 0 : index
    %c0_0 = arith.constant 0 : index
    %0 = vector.load %arg2[%c0, %c0_0] : memref<8x8xf32, #tpu.memory_space<vmem>>, vector<8x8xf32>
    %cst = arith.constant dense<0.000000e+00> : vector<8xf32>
    %1 = vector.multi_reduction <add>, %0, %cst [1] : vector<8x8xf32> to vector<8xf32>
    %2 = vector.shape_cast %1 : vector<8xf32> to vector<8x1xf32>
    %c0_1 = arith.constant 0 : index
    %c0_2 = arith.constant 0 : index
    %3 = vector.load %arg1[%c0_1, %c0_2] : memref<8x32xf32, #tpu.memory_space<vmem>>, vector<8x32xf32>
    %cst_3 = arith.constant dense<0.000000e+00> : vector<8x32xf32>
    %4 = tpu.matmul %0, %3, %cst_3 {dimension_numbers = #tpu.dot_dimension_numbers<[1], [0], [0], [1], [0, 0, 1, 1], [], []>} : vector<8x8xf32>, vector<8x32xf32>, vector<8x32xf32> -> vector<8x32xf32>
    %5 = vector.broadcast %2 : vector<8x1xf32> to vector<8x32xf32>
    %6 = arith.divf %4, %5 : vector<8x32xf32>
    %c0_4 = arith.constant 0 : index
    %c0_5 = arith.constant 0 : index
    %7 = vector.load %arg0[%c0_4, %c0_5] : memref<2x32xf32, #tpu.memory_space<vmem>>, vector<2x32xf32>
    %c0_6 = arith.constant 0 : index
    %c0_7 = arith.constant 0 : index
    %8 = vector.load %arg3[%c0_6, %c0_7] : memref<32x16xf32, #tpu.memory_space<vmem>>, vector<32x16xf32>
    %cst_8 = arith.constant dense<0.000000e+00> : vector<2x16xf32>
    %9 = tpu.matmul %7, %8, %cst_8 {dimension_numbers = #tpu.dot_dimension_numbers<[1], [0], [0], [1], [0, 0, 1, 1], [], []>} : vector<2x32xf32>, vector<32x16xf32>, vector<2x16xf32> -> vector<2x16xf32>
    %c0_9 = arith.constant 0 : index
    %c0_10 = arith.constant 0 : index
    %10 = vector.load %arg4[%c0_9, %c0_10] : memref<32x16xf32, #tpu.memory_space<vmem>>, vector<32x16xf32>
    %cst_11 = arith.constant dense<0.000000e+00> : vector<8x16xf32>
    %11 = tpu.matmul %6, %10, %cst_11 {dimension_numbers = #tpu.dot_dimension_numbers<[1], [0], [0], [1], [0, 0, 1, 1], [], []>} : vector<8x32xf32>, vector<32x16xf32>, vector<8x16xf32> -> vector<8x16xf32>
    %c0_12 = arith.constant 0 : index
    %c0_13 = arith.constant 0 : index
    %12 = vector.load %arg5[%c0_12, %c0_13] : memref<1x16xf32, #tpu.memory_space<vmem>>, vector<1x16xf32>
    %13 = vector.broadcast %12 : vector<1x16xf32> to vector<8x16xf32>
    %14 = arith.addf %11, %13 : vector<8x16xf32>
    %cst_14 = arith.constant dense<0.000000e+00> : vector<16xf32>
    %15 = vector.multi_reduction <add>, %9, %cst_14 [0] : vector<2x16xf32> to vector<16xf32>
    %16 = vector.shape_cast %15 : vector<16xf32> to vector<1x16xf32>
    %cst_15 = arith.constant 2.000000e+00 : f32
    %17 = vector.broadcast %cst_15 : f32 to vector<1x16xf32>
    %18 = arith.divf %16, %17 : vector<1x16xf32>
    %cst_16 = arith.constant dense<0.000000e+00> : vector<16xf32>
    %19 = vector.multi_reduction <add>, %14, %cst_16 [0] : vector<8x16xf32> to vector<16xf32>
    %20 = vector.shape_cast %19 : vector<16xf32> to vector<1x16xf32>
    %cst_17 = arith.constant 8.000000e+00 : f32
    %21 = vector.broadcast %cst_17 : f32 to vector<1x16xf32>
    %22 = arith.divf %20, %21 : vector<1x16xf32>
    %23 = arith.mulf %9, %9 : vector<2x16xf32>
    %cst_18 = arith.constant dense<0.000000e+00> : vector<16xf32>
    %24 = vector.multi_reduction <add>, %23, %cst_18 [0] : vector<2x16xf32> to vector<16xf32>
    %25 = vector.shape_cast %24 : vector<16xf32> to vector<1x16xf32>
    %cst_19 = arith.constant 2.000000e+00 : f32
    %26 = vector.broadcast %cst_19 : f32 to vector<1x16xf32>
    %27 = arith.divf %25, %26 : vector<1x16xf32>
    %28 = arith.mulf %18, %18 : vector<1x16xf32>
    %29 = arith.subf %27, %28 : vector<1x16xf32>
    %30 = arith.mulf %14, %14 : vector<8x16xf32>
    %cst_20 = arith.constant dense<0.000000e+00> : vector<16xf32>
    %31 = vector.multi_reduction <add>, %30, %cst_20 [0] : vector<8x16xf32> to vector<16xf32>
    %32 = vector.shape_cast %31 : vector<16xf32> to vector<1x16xf32>
    %cst_21 = arith.constant 8.000000e+00 : f32
    %33 = vector.broadcast %cst_21 : f32 to vector<1x16xf32>
    %34 = arith.divf %32, %33 : vector<1x16xf32>
    %35 = arith.mulf %22, %22 : vector<1x16xf32>
    %36 = arith.subf %34, %35 : vector<1x16xf32>
    %37 = arith.addf %29, %36 : vector<1x16xf32>
    %cst_22 = arith.constant 9.99999974E-6 : f32
    %38 = vector.broadcast %cst_22 : f32 to vector<1x16xf32>
    %39 = arith.addf %37, %38 : vector<1x16xf32>
    %40 = math.rsqrt %39 : vector<1x16xf32>
    %c0_23 = arith.constant 0 : index
    %c0_24 = arith.constant 0 : index
    %41 = vector.load %arg6[%c0_23, %c0_24] : memref<1x16xf32, #tpu.memory_space<vmem>>, vector<1x16xf32>
    %42 = arith.mulf %40, %41 : vector<1x16xf32>
    %43 = vector.broadcast %42 : vector<1x16xf32> to vector<2x16xf32>
    %44 = arith.mulf %9, %43 : vector<2x16xf32>
    %45 = arith.addf %18, %22 : vector<1x16xf32>
    %46 = vector.broadcast %45 : vector<1x16xf32> to vector<8x16xf32>
    %47 = arith.subf %14, %46 : vector<8x16xf32>
    %48 = vector.broadcast %42 : vector<1x16xf32> to vector<8x16xf32>
    %49 = arith.mulf %47, %48 : vector<8x16xf32>
    %c0_25 = arith.constant 0 : index
    %c0_26 = arith.constant 0 : index
    %50 = vector.load %arg7[%c0_25, %c0_26] : memref<1x16xf32, #tpu.memory_space<vmem>>, vector<1x16xf32>
    %51 = vector.broadcast %50 : vector<1x16xf32> to vector<8x16xf32>
    %52 = arith.addf %49, %51 : vector<8x16xf32>
    %c0_27 = arith.constant 0 : index
    %c0_28 = arith.constant 0 : index
    %53 = vector.load %arg8[%c0_27, %c0_28] : memref<16x8xf32, #tpu.memory_space<vmem>>, vector<16x8xf32>
    %cst_29 = arith.constant dense<0.000000e+00> : vector<2x8xf32>
    %54 = tpu.matmul %44, %53, %cst_29 {dimension_numbers = #tpu.dot_dimension_numbers<[1], [0], [0], [1], [0, 0, 1, 1], [], []>} : vector<2x16xf32>, vector<16x8xf32>, vector<2x8xf32> -> vector<2x8xf32>
    %c0_30 = arith.constant 0 : index
    %c0_31 = arith.constant 0 : index
    %55 = vector.load %arg8[%c0_30, %c0_31] : memref<16x8xf32, #tpu.memory_space<vmem>>, vector<16x8xf32>
    %cst_32 = arith.constant dense<0.000000e+00> : vector<8x8xf32>
    %56 = tpu.matmul %52, %55, %cst_32 {dimension_numbers = #tpu.dot_dimension_numbers<[1], [0], [0], [1], [0, 0, 1, 1], [], []>} : vector<8x16xf32>, vector<16x8xf32>, vector<8x8xf32> -> vector<8x8xf32>
    %c0_33 = arith.constant 0 : index
    %c0_34 = arith.constant 0 : index
    %57 = vector.load %arg9[%c0_33, %c0_34] : memref<1x8xf32, #tpu.memory_space<vmem>>, vector<1x8xf32>
    %58 = vector.broadcast %57 : vector<1x8xf32> to vector<8x8xf32>
    %59 = arith.addf %56, %58 : vector<8x8xf32>
    %cst_35 = arith.constant dense<0.000000e+00> : vector<8xf32>
    %60 = vector.multi_reduction <add>, %54, %cst_35 [0] : vector<2x8xf32> to vector<8xf32>
    %61 = vector.shape_cast %60 : vector<8xf32> to vector<1x8xf32>
    %cst_36 = arith.constant 2.000000e+00 : f32
    %62 = vector.broadcast %cst_36 : f32 to vector<1x8xf32>
    %63 = arith.divf %61, %62 : vector<1x8xf32>
    %cst_37 = arith.constant dense<0.000000e+00> : vector<8xf32>
    %64 = vector.multi_reduction <add>, %59, %cst_37 [0] : vector<8x8xf32> to vector<8xf32>
    %65 = vector.shape_cast %64 : vector<8xf32> to vector<1x8xf32>
    %cst_38 = arith.constant 8.000000e+00 : f32
    %66 = vector.broadcast %cst_38 : f32 to vector<1x8xf32>
    %67 = arith.divf %65, %66 : vector<1x8xf32>
    %68 = arith.mulf %54, %54 : vector<2x8xf32>
    %cst_39 = arith.constant dense<0.000000e+00> : vector<8xf32>
    %69 = vector.multi_reduction <add>, %68, %cst_39 [0] : vector<2x8xf32> to vector<8xf32>
    %70 = vector.shape_cast %69 : vector<8xf32> to vector<1x8xf32>
    %cst_40 = arith.constant 2.000000e+00 : f32
    %71 = vector.broadcast %cst_40 : f32 to vector<1x8xf32>
    %72 = arith.divf %70, %71 : vector<1x8xf32>
    %73 = arith.mulf %63, %63 : vector<1x8xf32>
    %74 = arith.subf %72, %73 : vector<1x8xf32>
    %75 = arith.mulf %59, %59 : vector<8x8xf32>
    %cst_41 = arith.constant dense<0.000000e+00> : vector<8xf32>
    %76 = vector.multi_reduction <add>, %75, %cst_41 [0] : vector<8x8xf32> to vector<8xf32>
    %77 = vector.shape_cast %76 : vector<8xf32> to vector<1x8xf32>
    %cst_42 = arith.constant 8.000000e+00 : f32
    %78 = vector.broadcast %cst_42 : f32 to vector<1x8xf32>
    %79 = arith.divf %77, %78 : vector<1x8xf32>
    %80 = arith.mulf %67, %67 : vector<1x8xf32>
    %81 = arith.subf %79, %80 : vector<1x8xf32>
    %82 = arith.addf %74, %81 : vector<1x8xf32>
    %cst_43 = arith.constant 9.99999974E-6 : f32
    %83 = vector.broadcast %cst_43 : f32 to vector<1x8xf32>
    %84 = arith.addf %82, %83 : vector<1x8xf32>
    %85 = math.rsqrt %84 : vector<1x8xf32>
    %c0_44 = arith.constant 0 : index
    %c0_45 = arith.constant 0 : index
    %86 = vector.load %arg10[%c0_44, %c0_45] : memref<1x8xf32, #tpu.memory_space<vmem>>, vector<1x8xf32>
    %87 = arith.mulf %85, %86 : vector<1x8xf32>
    %88 = vector.broadcast %87 : vector<1x8xf32> to vector<2x8xf32>
    %89 = arith.mulf %54, %88 : vector<2x8xf32>
    %90 = arith.addf %63, %67 : vector<1x8xf32>
    %91 = vector.broadcast %90 : vector<1x8xf32> to vector<8x8xf32>
    %92 = arith.subf %59, %91 : vector<8x8xf32>
    %93 = vector.broadcast %87 : vector<1x8xf32> to vector<8x8xf32>
    %94 = arith.mulf %92, %93 : vector<8x8xf32>
    %c0_46 = arith.constant 0 : index
    %c0_47 = arith.constant 0 : index
    %95 = vector.load %arg11[%c0_46, %c0_47] : memref<1x8xf32, #tpu.memory_space<vmem>>, vector<1x8xf32>
    %96 = vector.broadcast %95 : vector<1x8xf32> to vector<8x8xf32>
    %97 = arith.addf %94, %96 : vector<8x8xf32>
    %c0_48 = arith.constant 0 : index
    %c0_49 = arith.constant 0 : index
    %98 = vector.load %arg12[%c0_48, %c0_49] : memref<1x8xf32, #tpu.memory_space<vmem>>, vector<1x8xf32>
    %99 = vector.broadcast %98 : vector<1x8xf32> to vector<2x8xf32>
    %100 = arith.mulf %89, %99 : vector<2x8xf32>
    %cst_50 = arith.constant dense<0.000000e+00> : vector<2xf32>
    %101 = vector.multi_reduction <add>, %100, %cst_50 [1] : vector<2x8xf32> to vector<2xf32>
    %102 = vector.shape_cast %101 : vector<2xf32> to vector<2x1xf32>
    %103 = tpu.transpose %97, [1, 0] : vector<8x8xf32> -> vector<8x8xf32>
    %cst_51 = arith.constant dense<0.000000e+00> : vector<1x8xf32>
    %104 = tpu.matmul %98, %103, %cst_51 {dimension_numbers = #tpu.dot_dimension_numbers<[1], [0], [0], [1], [0, 0, 1, 1], [], []>} : vector<1x8xf32>, vector<8x8xf32>, vector<1x8xf32> -> vector<1x8xf32>
    %105 = vector.broadcast %102 : vector<2x1xf32> to vector<2x8xf32>
    %106 = vector.broadcast %104 : vector<1x8xf32> to vector<2x8xf32>
    %107 = arith.addf %105, %106 : vector<2x8xf32>
    %c0_52 = arith.constant 0 : index
    %c0_53 = arith.constant 0 : index
    %108 = vector.load %arg13[%c0_52, %c0_53] : memref<1x1xf32, #tpu.memory_space<vmem>>, vector<1x1xf32>
    %109 = vector.broadcast %108 : vector<1x1xf32> to vector<2x8xf32>
    %110 = arith.addf %107, %109 : vector<2x8xf32>
    %c0_54 = arith.constant 0 : index
    %c0_55 = arith.constant 0 : index
    %111 = vector.load %arg14[%c0_54, %c0_55] : memref<2x8xf32, #tpu.memory_space<vmem>>, vector<2x8xf32>
    tpu.vector_store %arg14[%c0_54, %c0_55], %110 {strides = array<i32>} : memref<2x8xf32, #tpu.memory_space<vmem>>, vector<2x8xf32>,
    return
  }
}

</mosaic_0001>

<llo_original>
// kernel: tpu_custom_call.1
$region0: #{tpu_custom_call.1}
  #allocation0 [shape = 'u32[]', space=smem, size = 0x4, offset = 0x4, fixed_abs, tag = 'smem constant byte address 0x4 - core index']
  #allocation1 [shape = 'u32[144,128]{1,0:T(1,128)}', space=vmem, size = 0x12000, scoped, tag = 'internal scratch']
  #allocation2 [shape = 'f32[1,1]{1,0:T(1,128)S(1)}', space=vmem, size = 0x200, scoped, tag = 'scoped memory for tpu_custom_call.1']
  %s0 = inlined_call_operand.vmem [shape: f32[2,32], index: 0, kind: input, shape index: {}]
  %s1 = inlined_call_operand.vmem [shape: f32[8,32], index: 1, kind: input, shape index: {}]
  %s2 = inlined_call_operand.vmem [shape: f32[8,8], index: 2, kind: input, shape index: {}]
  %s3 = inlined_call_operand.vmem [shape: f32[32,16], index: 3, kind: input, shape index: {}]
  %s4 = inlined_call_operand.vmem [shape: f32[32,16], index: 4, kind: input, shape index: {}]
  %s5 = inlined_call_operand.vmem [shape: f32[1,16], index: 5, kind: input, shape index: {}]
  %s6 = inlined_call_operand.vmem [shape: f32[1,16], index: 6, kind: input, shape index: {}]
  %s7 = inlined_call_operand.vmem [shape: f32[1,16], index: 7, kind: input, shape index: {}]
  %s8 = inlined_call_operand.vmem [shape: f32[16,8], index: 8, kind: input, shape index: {}]
  %s9 = inlined_call_operand.vmem [shape: f32[1,8], index: 9, kind: input, shape index: {}]
  %s10 = inlined_call_operand.vmem [shape: f32[1,8], index: 10, kind: input, shape index: {}]
  %s11 = inlined_call_operand.vmem [shape: f32[1,8], index: 11, kind: input, shape index: {}]
  %s12 = inlined_call_operand.vmem [shape: f32[1,8], index: 12, kind: input, shape index: {}]
  %s13 = inlined_call_operand.<no memory space> [shape: f32[1,1], index: 13, kind: input, shape index: {}]
  %s14 = inlined_call_operand.hbm [shape: f32[2,8], index: 14, kind: output, shape index: {}]
  %s15 = sld [smem:[#allocation0]]
  $region66: #{tpu_custom_call.1} parent=0
    _
  %s17 = ssub.s32 1, %s15
  %s18 = scalar_select 0, %s17, %s15
  %v19 = vstv %s13
  %20 = vst [vmem:[#allocation2] sm:$0x1] %v19
  $region1: #{tpu_custom_call.1} parent=0
    #allocation3 [shape = 'u8[1024]{0}', space=vmem, size = 0x400, scoped, tag = 'output window, operand 0, single buffered']
    #allocation4 [shape = 's32[1]{0}', space=sflag, size = 0x4, scoped, tag = 'scoped memory for tpu_custom_call.1']
    %21 = vsyncpa [#allocation4], 0
    // Predicated region
    $region2: #{tpu_custom_call.1} parent=1 // pred_check
      _
    $region3: #{tpu_custom_call.1} parent=1 // pred_check_branch
      %23 = sbr.rel (0) target = $region5
    $region4: #{tpu_custom_call.1} parent=1 // pred_region
      _
    $region5: #{tpu_custom_call.1} parent=1 // pred_fallthru
      _
    // Predicated region
    $region6: #{tpu_custom_call.1} parent=1 // pred_check
      _
    $region7: #{tpu_custom_call.1} parent=1 // pred_check_branch
      %25 = sbr.rel (0) target = $region9
    $region8: #{tpu_custom_call.1} parent=1 // pred_region
      _
    $region9: #{tpu_custom_call.1} parent=1 // pred_fallthru
      _
    // Predicated region
    $region10: #{tpu_custom_call.1} parent=1 // pred_check
      _
    $region11: #{tpu_custom_call.1} parent=1 // pred_check_branch
      %27 = sbr.rel (0) target = $region13
    $region12: #{tpu_custom_call.1} parent=1 // pred_region
      _
    $region13: #{tpu_custom_call.1} parent=1 // pred_fallthru
      _
    // Predicated region
    $region14: #{tpu_custom_call.1} parent=1 // pred_check
      _
    $region15: #{tpu_custom_call.1} parent=1 // pred_check_branch
      %29 = sbr.rel (0) target = $region17
    $region16: #{tpu_custom_call.1} parent=1 // pred_region
      _
    $region17: #{tpu_custom_call.1} parent=1 // pred_fallthru
      _
    // Predicated region
    $region18: #{tpu_custom_call.1} parent=1 // pred_check
      _
    $region19: #{tpu_custom_call.1} parent=1 // pred_check_branch
      %31 = sbr.rel (0) target = $region21
    $region20: #{tpu_custom_call.1} parent=1 // pred_region
      _
    $region21: #{tpu_custom_call.1} parent=1 // pred_fallthru
      _
    // Predicated region
    $region22: #{tpu_custom_call.1} parent=1 // pred_check
      _
    $region23: #{tpu_custom_call.1} parent=1 // pred_check_branch
      %33 = sbr.rel (0) target = $region25
    $region24: #{tpu_custom_call.1} parent=1 // pred_region
      _
    $region25: #{tpu_custom_call.1} parent=1 // pred_fallthru
      _
    // Predicated region
    $region26: #{tpu_custom_call.1} parent=1 // pred_check
      _
    $region27: #{tpu_custom_call.1} parent=1 // pred_check_branch
      %35 = sbr.rel (0) target = $region29
    $region28: #{tpu_custom_call.1} parent=1 // pred_region
      _
    $region29: #{tpu_custom_call.1} parent=1 // pred_fallthru
      _
    // Predicated region
    $region30: #{tpu_custom_call.1} parent=1 // pred_check
      _
    $region31: #{tpu_custom_call.1} parent=1 // pred_check_branch
      %37 = sbr.rel (0) target = $region33
    $region32: #{tpu_custom_call.1} parent=1 // pred_region
      _
    $region33: #{tpu_custom_call.1} parent=1 // pred_fallthru
      _
    // Predicated region
    $region34: #{tpu_custom_call.1} parent=1 // pred_check
      _
    $region35: #{tpu_custom_call.1} parent=1 // pred_check_branch
      %39 = sbr.rel (0) target = $region37
    $region36: #{tpu_custom_call.1} parent=1 // pred_region
      _
    $region37: #{tpu_custom_call.1} parent=1 // pred_fallthru
      _
    // Predicated region
    $region38: #{tpu_custom_call.1} parent=1 // pred_check
      _
    $region39: #{tpu_custom_call.1} parent=1 // pred_check_branch
      %41 = sbr.rel (0) target = $region41
    $region40: #{tpu_custom_call.1} parent=1 // pred_region
      _
    $region41: #{tpu_custom_call.1} parent=1 // pred_fallthru
      _
    // Predicated region
    $region42: #{tpu_custom_call.1} parent=1 // pred_check
      _
    $region43: #{tpu_custom_call.1} parent=1 // pred_check_branch
      %43 = sbr.rel (0) target = $region45
    $region44: #{tpu_custom_call.1} parent=1 // pred_region
      _
    $region45: #{tpu_custom_call.1} parent=1 // pred_fallthru
      _
    // Predicated region
    $region46: #{tpu_custom_call.1} parent=1 // pred_check
      _
    $region47: #{tpu_custom_call.1} parent=1 // pred_check_branch
      %45 = sbr.rel (0) target = $region49
    $region48: #{tpu_custom_call.1} parent=1 // pred_region
      _
    $region49: #{tpu_custom_call.1} parent=1 // pred_fallthru
      _
    // Predicated region
    $region50: #{tpu_custom_call.1} parent=1 // pred_check
      _
    $region51: #{tpu_custom_call.1} parent=1 // pred_check_branch
      %47 = sbr.rel (0) target = $region53
    $region52: #{tpu_custom_call.1} parent=1 // pred_region
      _
    $region53: #{tpu_custom_call.1} parent=1 // pred_fallthru
      _
    // Predicated region
    $region54: #{tpu_custom_call.1} parent=1 // pred_check
      _
    $region55: #{tpu_custom_call.1} parent=1 // pred_check_branch
      %49 = sbr.rel (0) target = $region57
    $region56: #{tpu_custom_call.1} parent=1 // pred_region
      _
    $region57: #{tpu_custom_call.1} parent=1 // pred_fallthru
      _
    %v50 = vld [vmem:[%s2] sm:$0xff]
    %vm51 = vcmask 64512
    %v52 = vsel %vm51, %v50, 0.0
    %53 = vadd.xlane.f32.xlu0 %v52
    %v54 = vpop.xlane.xlu0 %53
    %v55 = vld [vmem:[%s1] sm:$0xff]
    %v57 = vsel %vm51, %v50, 0
    %59 = vmatprep.subr.mxu0 0.0
    %60 = vmatpush1.msra.mxu0 0.0
    %61 = vmatprep.subr.mxu0 0.0
    %62 = vmatpush1.msra.mxu0 0.0
    %63 = vmatprep.subr.mxu0 0.0
    %64 = vmatpush1.msra.mxu0 0.0
    %65 = vmatprep.subr.mxu0 0.0
    %66 = vmatpush1.msra.mxu0 0.0
    %67 = vmatprep.subr.mxu0 0.0
    %68 = vmatpush1.msra.mxu0 0.0
    %69 = vmatprep.subr.mxu0 0.0
    %70 = vmatpush1.msra.mxu0 0.0
    %71 = vmatprep.subr.mxu0 0.0
    %72 = vmatpush1.msra.mxu0 0.0
    %73 = vmatprep.subr.mxu0 0.0
    %74 = vmatpush1.msra.mxu0 0.0
    %75 = vmatprep.subr.mxu0 0.0
    %76 = vmatpush1.msra.mxu0 0.0
    %77 = vmatprep.subr.mxu0 0.0
    %78 = vmatpush1.msra.mxu0 0.0
    %79 = vmatprep.subr.mxu0 0.0
    %80 = vmatpush1.msra.mxu0 0.0
    %81 = vmatprep.subr.mxu0 0.0
    %82 = vmatpush1.msra.mxu0 0.0
    %83 = vmatprep.subr.mxu0 0.0
    %84 = vmatpush1.msra.mxu0 0.0
    %85 = vmatprep.subr.mxu0 0.0
    %86 = vmatpush1.msra.mxu0 0.0
    %87 = vmatprep.subr.mxu0 0.0
    %88 = vmatpush1.msra.mxu0 0.0
    %89 = vmatprep.subr.mxu0 0.0
    %90 = vmatpush1.msra.mxu0 %v55
    %91 = vmatprep.subr.mxu0 0.0
    %92 = vmatpush2.msra.mxu0 0.0
    %93 = vmatprep.subr.mxu0 0.0
    %94 = vmatpush2.msra.mxu0 0.0
    %95 = vmatprep.subr.mxu0 0.0
    %96 = vmatpush2.msra.mxu0 0.0
    %97 = vmatprep.subr.mxu0 0.0
    %98 = vmatpush2.msra.mxu0 0.0
    %99 = vmatprep.subr.mxu0 0.0
    %100 = vmatpush2.msra.mxu0 0.0
    %101 = vmatprep.subr.mxu0 0.0
    %102 = vmatpush2.msra.mxu0 0.0
    %103 = vmatprep.subr.mxu0 0.0
    %104 = vmatpush2.msra.mxu0 0.0
    %105 = vmatprep.subr.mxu0 0.0
    %106 = vmatpush2.msra.mxu0 0.0
    %107 = vmatprep.subr.mxu0 0.0
    %108 = vmatpush2.msra.mxu0 0.0
    %109 = vmatprep.subr.mxu0 0.0
    %110 = vmatpush2.msra.mxu0 0.0
    %111 = vmatprep.subr.mxu0 0.0
    %112 = vmatpush2.msra.mxu0 0.0
    %113 = vmatprep.subr.mxu0 0.0
    %114 = vmatpush2.msra.mxu0 0.0
    %115 = vmatprep.subr.mxu0 0.0
    %116 = vmatpush2.msra.mxu0 0.0
    %117 = vmatprep.subr.mxu0 0.0
    %118 = vmatpush2.msra.mxu0 0.0
    %119 = vmatprep.subr.mxu0 0.0
    %120 = vmatpush2.msra.mxu0 0.0
    %121 = vmatprep.subr.mxu0 0.0
    %122 = vmatpush2.msra.mxu0 0.0
    %123 = vmatprep.mubr.f32.mxu0 0.0
    %124 = vmatmul.mubr.f32.gmra.mxu0 %v57
    %v125 = vpop.f32.mrf.mxu0
    %v126 = vadd.f32 0.0, %v125
    %v127 = vpop.f32.mrf.mxu0
    %128 = vdwg.mxu0
    %v129 = vrcp.pop %v54
    %v130 = vmul.f32 %v126, %v129
    %v131 = vld [vmem:[%s0] sm:$0x3]
    %v132 = vld [vmem:[%s3] sm:$0xff]
    %v133 = vld [vmem:[%s3 + $0x8] sm:$0xff]
    %v134 = vld [vmem:[%s3 + $0x10] sm:$0xff]
    %v135 = vld [vmem:[%s3 + $0x18] sm:$0xff]
    %vm136 = vcmask 261120
    %v138 = vsel %vm136, %v131, 0
    %140 = vmatprep.subr.mxu0 0.0
    %141 = vmatpush1.msra.mxu0 0.0
    %142 = vmatprep.subr.mxu0 0.0
    %143 = vmatpush1.msra.mxu0 0.0
    %144 = vmatprep.subr.mxu0 0.0
    %145 = vmatpush1.msra.mxu0 0.0
    %146 = vmatprep.subr.mxu0 0.0
    %147 = vmatpush1.msra.mxu0 0.0
    %148 = vmatprep.subr.mxu0 0.0
    %149 = vmatpush1.msra.mxu0 0.0
    %150 = vmatprep.subr.mxu0 0.0
    %151 = vmatpush1.msra.mxu0 0.0
    %152 = vmatprep.subr.mxu0 0.0
    %153 = vmatpush1.msra.mxu0 0.0
    %154 = vmatprep.subr.mxu0 0.0
    %155 = vmatpush1.msra.mxu0 0.0
    %156 = vmatprep.subr.mxu0 0.0
    %157 = vmatpush1.msra.mxu0 0.0
    %158 = vmatprep.subr.mxu0 0.0
    %159 = vmatpush1.msra.mxu0 0.0
    %160 = vmatprep.subr.mxu0 0.0
    %161 = vmatpush1.msra.mxu0 0.0
    %162 = vmatprep.subr.mxu0 0.0
    %163 = vmatpush1.msra.mxu0 0.0
    %164 = vmatprep.subr.mxu0 0.0
    %165 = vmatpush1.msra.mxu0 %v135
    %166 = vmatprep.subr.mxu0 0.0
    %167 = vmatpush1.msra.mxu0 %v134
    %168 = vmatprep.subr.mxu0 0.0
    %169 = vmatpush1.msra.mxu0 %v133
    %170 = vmatprep.subr.mxu0 0.0
    %171 = vmatpush1.msra.mxu0 %v132
    %172 = vmatprep.subr.mxu0 0.0
    %173 = vmatpush2.msra.mxu0 0.0
    %174 = vmatprep.subr.mxu0 0.0
    %175 = vmatpush2.msra.mxu0 0.0
    %176 = vmatprep.subr.mxu0 0.0
    %177 = vmatpush2.msra.mxu0 0.0
    %178 = vmatprep.subr.mxu0 0.0
    %179 = vmatpush2.msra.mxu0 0.0
    %180 = vmatprep.subr.mxu0 0.0
    %181 = vmatpush2.msra.mxu0 0.0
    %182 = vmatprep.subr.mxu0 0.0
    %183 = vmatpush2.msra.mxu0 0.0
    %184 = vmatprep.subr.mxu0 0.0
    %185 = vmatpush2.msra.mxu0 0.0
    %186 = vmatprep.subr.mxu0 0.0
    %187 = vmatpush2.msra.mxu0 0.0
    %188 = vmatprep.subr.mxu0 0.0
    %189 = vmatpush2.msra.mxu0 0.0
    %190 = vmatprep.subr.mxu0 0.0
    %191 = vmatpush2.msra.mxu0 0.0
    %192 = vmatprep.subr.mxu0 0.0
    %193 = vmatpush2.msra.mxu0 0.0
    %194 = vmatprep.subr.mxu0 0.0
    %195 = vmatpush2.msra.mxu0 0.0
    %196 = vmatprep.subr.mxu0 0.0
    %197 = vmatpush2.msra.mxu0 0.0
    %198 = vmatprep.subr.mxu0 0.0
    %199 = vmatpush2.msra.mxu0 0.0
    %200 = vmatprep.subr.mxu0 0.0
    %201 = vmatpush2.msra.mxu0 0.0
    %202 = vmatprep.subr.mxu0 0.0
    %203 = vmatpush2.msra.mxu0 0.0
    %204 = vmatprep.mubr.f32.mxu0 0.0
    %205 = vmatmul.mubr.f32.gmra.mxu0 %v138
    %v206 = vpop.f32.mrf.mxu0
    %v207 = vadd.f32 0.0, %v206
    %v208 = vpop.f32.mrf.mxu0
    %209 = vdwg.mxu0
    %v210 = vld [vmem:[%s4] sm:$0xff]
    %v211 = vld [vmem:[%s4 + $0x8] sm:$0xff]
    %v212 = vld [vmem:[%s4 + $0x10] sm:$0xff]
    %v213 = vld [vmem:[%s4 + $0x18] sm:$0xff]
    %v214 = vld [vmem:[%s5] sm:$0x1]
    %v216 = vlaneseq
    %v217 = vshrl.u32 %v216, 7
    %v218 = vsub.s32 0, %v217
    %v219 = vrot.slane %v214, %v218
    %v222 = vsel %vm136, %v130, 0
    %224 = vmatprep.subr.mxu0 0.0
    %225 = vmatpush1.msra.mxu0 0.0
    %226 = vmatprep.subr.mxu0 0.0
    %227 = vmatpush1.msra.mxu0 0.0
    %228 = vmatprep.subr.mxu0 0.0
    %229 = vmatpush1.msra.mxu0 0.0
    %230 = vmatprep.subr.mxu0 0.0
    %231 = vmatpush1.msra.mxu0 0.0
    %232 = vmatprep.subr.mxu0 0.0
    %233 = vmatpush1.msra.mxu0 0.0
    %234 = vmatprep.subr.mxu0 0.0
    %235 = vmatpush1.msra.mxu0 0.0
    %236 = vmatprep.subr.mxu0 0.0
    %237 = vmatpush1.msra.mxu0 0.0
    %238 = vmatprep.subr.mxu0 0.0
    %239 = vmatpush1.msra.mxu0 0.0
    %240 = vmatprep.subr.mxu0 0.0
    %241 = vmatpush1.msra.mxu0 0.0
    %242 = vmatprep.subr.mxu0 0.0
    %243 = vmatpush1.msra.mxu0 0.0
    %244 = vmatprep.subr.mxu0 0.0
    %245 = vmatpush1.msra.mxu0 0.0
    %246 = vmatprep.subr.mxu0 0.0
    %247 = vmatpush1.msra.mxu0 0.0
    %248 = vmatprep.subr.mxu0 0.0
    %249 = vmatpush1.msra.mxu0 %v213
    %250 = vmatprep.subr.mxu0 0.0
    %251 = vmatpush1.msra.mxu0 %v212
    %252 = vmatprep.subr.mxu0 0.0
    %253 = vmatpush1.msra.mxu0 %v211
    %254 = vmatprep.subr.mxu0 0.0
    %255 = vmatpush1.msra.mxu0 %v210
    %256 = vmatprep.subr.mxu0 0.0
    %257 = vmatpush2.msra.mxu0 0.0
    %258 = vmatprep.subr.mxu0 0.0
    %259 = vmatpush2.msra.mxu0 0.0
    %260 = vmatprep.subr.mxu0 0.0
    %261 = vmatpush2.msra.mxu0 0.0
    %262 = vmatprep.subr.mxu0 0.0
    %263 = vmatpush2.msra.mxu0 0.0
    %264 = vmatprep.subr.mxu0 0.0
    %265 = vmatpush2.msra.mxu0 0.0
    %266 = vmatprep.subr.mxu0 0.0
    %267 = vmatpush2.msra.mxu0 0.0
    %268 = vmatprep.subr.mxu0 0.0
    %269 = vmatpush2.msra.mxu0 0.0
    %270 = vmatprep.subr.mxu0 0.0
    %271 = vmatpush2.msra.mxu0 0.0
    %272 = vmatprep.subr.mxu0 0.0
    %273 = vmatpush2.msra.mxu0 0.0
    %274 = vmatprep.subr.mxu0 0.0
    %275 = vmatpush2.msra.mxu0 0.0
    %276 = vmatprep.subr.mxu0 0.0
    %277 = vmatpush2.msra.mxu0 0.0
    %278 = vmatprep.subr.mxu0 0.0
    %279 = vmatpush2.msra.mxu0 0.0
    %280 = vmatprep.subr.mxu0 0.0
    %281 = vmatpush2.msra.mxu0 0.0
    %282 = vmatprep.subr.mxu0 0.0
    %283 = vmatpush2.msra.mxu0 0.0
    %284 = vmatprep.subr.mxu0 0.0
    %285 = vmatpush2.msra.mxu0 0.0
    %286 = vmatprep.subr.mxu0 0.0
    %287 = vmatpush2.msra.mxu0 0.0
    %288 = vmatprep.mubr.f32.mxu0 0.0
    %289 = vmatmul.mubr.f32.gmra.mxu0 %v222
    %v290 = vpop.f32.mrf.mxu0
    %v291 = vadd.f32 %v219, %v290
    %v292 = vpop.f32.mrf.mxu0
    %293 = vdwg.mxu0
    %vm294 = vcmask 123904
    %v295 = vsel %vm294, %v207, 0.0
    %v296 = vrot.slane %v295, 4
    %v297 = vadd.f32 %v295, %v296
    %v298 = vrot.slane %v297, 2
    %v299 = vadd.f32 %v297, %v298
    %v300 = vrot.slane %v299, 1
    %v301 = vadd.f32 %v299, %v300
    %v302 = vrcp.pop 2.0
    %v303 = vmul.f32 %v301, %v302
    %vm304 = vcmask 130048
    %v305 = vsel %vm304, %v291, 0.0
    %v306 = vrot.slane %v305, 4
    %v307 = vadd.f32 %v305, %v306
    %v308 = vrot.slane %v307, 2
    %v309 = vadd.f32 %v307, %v308
    %v310 = vrot.slane %v309, 1
    %v311 = vadd.f32 %v309, %v310
    %v312 = vrcp.pop 8.0
    %v313 = vmul.f32 %v311, %v312
    %v314 = vmul.f32 %v207, %v207
    %v315 = vsel %vm294, %v314, 0.0
    %v316 = vrot.slane %v315, 4
    %v317 = vadd.f32 %v315, %v316
    %v318 = vrot.slane %v317, 2
    %v319 = vadd.f32 %v317, %v318
    %v320 = vrot.slane %v319, 1
    %v321 = vadd.f32 %v319, %v320
    %v322 = vmul.f32 %v321, %v302
    %v323 = vmul.f32 %v303, %v303
    %v324 = vsub.f32 %v322, %v323
    %v325 = vmul.f32 %v291, %v291
    %v326 = vsel %vm304, %v325, 0.0
    %v327 = vrot.slane %v326, 4
    %v328 = vadd.f32 %v326, %v327
    %v329 = vrot.slane %v328, 2
    %v330 = vadd.f32 %v328, %v329
    %v331 = vrot.slane %v330, 1
    %v332 = vadd.f32 %v330, %v331
    %v333 = vmul.f32 %v332, %v312
    %v334 = vmul.f32 %v313, %v313
    %v335 = vsub.f32 %v333, %v334
    %v336 = vadd.f32 %v324, %v335
    %v337 = vadd.f32 %v336, 1e-05
    %v338 = vrsqrt.pop %v337
    %v339 = vld [vmem:[%s6] sm:$0x1]
    %v340 = vmul.f32 %v338, %v339
    %v341 = vlaneseq
    %v342 = vshrl.u32 %v341, 7
    %v343 = vsub.s32 0, %v342
    %v344 = vrot.slane %v340, %v343
    %v345 = vmul.f32 %v207, %v344
    %v346 = vadd.f32 %v303, %v313
    %v347 = vsub.f32 %v291, %v346
    %v348 = vmul.f32 %v347, %v344
    %v349 = vld [vmem:[%s7] sm:$0x1]
    %v351 = vlaneseq
    %v352 = vshrl.u32 %v351, 7
    %v353 = vsub.s32 0, %v352
    %v354 = vrot.slane %v349, %v353
    %v356 = vadd.f32 %v348, %v354
    %v357 = vld [vmem:[%s8] sm:$0xff]
    %v358 = vld [vmem:[%s8 + $0x8] sm:$0xff]
    %v360 = vsel %vm304, %v345, 0
    %362 = vmatprep.subr.mxu0 0.0
    %363 = vmatpush1.msra.mxu0 0.0
    %364 = vmatprep.subr.mxu0 0.0
    %365 = vmatpush1.msra.mxu0 0.0
    %366 = vmatprep.subr.mxu0 0.0
    %367 = vmatpush1.msra.mxu0 0.0
    %368 = vmatprep.subr.mxu0 0.0
    %369 = vmatpush1.msra.mxu0 0.0
    %370 = vmatprep.subr.mxu0 0.0
    %371 = vmatpush1.msra.mxu0 0.0
    %372 = vmatprep.subr.mxu0 0.0
    %373 = vmatpush1.msra.mxu0 0.0
    %374 = vmatprep.subr.mxu0 0.0
    %375 = vmatpush1.msra.mxu0 0.0
    %376 = vmatprep.subr.mxu0 0.0
    %377 = vmatpush1.msra.mxu0 0.0
    %378 = vmatprep.subr.mxu0 0.0
    %379 = vmatpush1.msra.mxu0 0.0
    %380 = vmatprep.subr.mxu0 0.0
    %381 = vmatpush1.msra.mxu0 0.0
    %382 = vmatprep.subr.mxu0 0.0
    %383 = vmatpush1.msra.mxu0 0.0
    %384 = vmatprep.subr.mxu0 0.0
    %385 = vmatpush1.msra.mxu0 0.0
    %386 = vmatprep.subr.mxu0 0.0
    %387 = vmatpush1.msra.mxu0 0.0
    %388 = vmatprep.subr.mxu0 0.0
    %389 = vmatpush1.msra.mxu0 0.0
    %390 = vmatprep.subr.mxu0 0.0
    %391 = vmatpush1.msra.mxu0 %v358
    %392 = vmatprep.subr.mxu0 0.0
    %393 = vmatpush1.msra.mxu0 %v357
    %394 = vmatprep.subr.mxu0 0.0
    %395 = vmatpush2.msra.mxu0 0.0
    %396 = vmatprep.subr.mxu0 0.0
    %397 = vmatpush2.msra.mxu0 0.0
    %398 = vmatprep.subr.mxu0 0.0
    %399 = vmatpush2.msra.mxu0 0.0
    %400 = vmatprep.subr.mxu0 0.0
    %401 = vmatpush2.msra.mxu0 0.0
    %402 = vmatprep.subr.mxu0 0.0
    %403 = vmatpush2.msra.mxu0 0.0
    %404 = vmatprep.subr.mxu0 0.0
    %405 = vmatpush2.msra.mxu0 0.0
    %406 = vmatprep.subr.mxu0 0.0
    %407 = vmatpush2.msra.mxu0 0.0
    %408 = vmatprep.subr.mxu0 0.0
    %409 = vmatpush2.msra.mxu0 0.0
    %410 = vmatprep.subr.mxu0 0.0
    %411 = vmatpush2.msra.mxu0 0.0
    %412 = vmatprep.subr.mxu0 0.0
    %413 = vmatpush2.msra.mxu0 0.0
    %414 = vmatprep.subr.mxu0 0.0
    %415 = vmatpush2.msra.mxu0 0.0
    %416 = vmatprep.subr.mxu0 0.0
    %417 = vmatpush2.msra.mxu0 0.0
    %418 = vmatprep.subr.mxu0 0.0
    %419 = vmatpush2.msra.mxu0 0.0
    %420 = vmatprep.subr.mxu0 0.0
    %421 = vmatpush2.msra.mxu0 0.0
    %422 = vmatprep.subr.mxu0 0.0
    %423 = vmatpush2.msra.mxu0 0.0
    %424 = vmatprep.subr.mxu0 0.0
    %425 = vmatpush2.msra.mxu0 0.0
    %426 = vmatprep.mubr.f32.mxu0 0.0
    %427 = vmatmul.mubr.f32.gmra.mxu0 %v360
    %v428 = vpop.f32.mrf.mxu0
    %v429 = vadd.f32 0.0, %v428
    %v430 = vpop.f32.mrf.mxu0
    %431 = vdwg.mxu0
    %v432 = vld [vmem:[%s9] sm:$0x1]
    %v434 = vlaneseq
    %v435 = vshrl.u32 %v434, 7
    %v436 = vsub.s32 0, %v435
    %v437 = vrot.slane %v432, %v436
    %v440 = vsel %vm304, %v356, 0
    %442 = vmatprep.subr.mxu0 0.0
    %443 = vmatpush1.msra.mxu0 0.0
    %444 = vmatprep.subr.mxu0 0.0
    %445 = vmatpush1.msra.mxu0 0.0
    %446 = vmatprep.subr.mxu0 0.0
    %447 = vmatpush1.msra.mxu0 0.0
    %448 = vmatprep.subr.mxu0 0.0
    %449 = vmatpush1.msra.mxu0 0.0
    %450 = vmatprep.subr.mxu0 0.0
    %451 = vmatpush1.msra.mxu0 0.0
    %452 = vmatprep.subr.mxu0 0.0
    %453 = vmatpush1.msra.mxu0 0.0
    %454 = vmatprep.subr.mxu0 0.0
    %455 = vmatpush1.msra.mxu0 0.0
    %456 = vmatprep.subr.mxu0 0.0
    %457 = vmatpush1.msra.mxu0 0.0
    %458 = vmatprep.subr.mxu0 0.0
    %459 = vmatpush1.msra.mxu0 0.0
    %460 = vmatprep.subr.mxu0 0.0
    %461 = vmatpush1.msra.mxu0 0.0
    %462 = vmatprep.subr.mxu0 0.0
    %463 = vmatpush1.msra.mxu0 0.0
    %464 = vmatprep.subr.mxu0 0.0
    %465 = vmatpush1.msra.mxu0 0.0
    %466 = vmatprep.subr.mxu0 0.0
    %467 = vmatpush1.msra.mxu0 0.0
    %468 = vmatprep.subr.mxu0 0.0
    %469 = vmatpush1.msra.mxu0 0.0
    %470 = vmatprep.subr.mxu0 0.0
    %471 = vmatpush1.msra.mxu0 %v358
    %472 = vmatprep.subr.mxu0 0.0
    %473 = vmatpush1.msra.mxu0 %v357
    %474 = vmatprep.subr.mxu0 0.0
    %475 = vmatpush2.msra.mxu0 0.0
    %476 = vmatprep.subr.mxu0 0.0
    %477 = vmatpush2.msra.mxu0 0.0
    %478 = vmatprep.subr.mxu0 0.0
    %479 = vmatpush2.msra.mxu0 0.0
    %480 = vmatprep.subr.mxu0 0.0
    %481 = vmatpush2.msra.mxu0 0.0
    %482 = vmatprep.subr.mxu0 0.0
    %483 = vmatpush2.msra.mxu0 0.0
    %484 = vmatprep.subr.mxu0 0.0
    %485 = vmatpush2.msra.mxu0 0.0
    %486 = vmatprep.subr.mxu0 0.0
    %487 = vmatpush2.msra.mxu0 0.0
    %488 = vmatprep.subr.mxu0 0.0
    %489 = vmatpush2.msra.mxu0 0.0
    %490 = vmatprep.subr.mxu0 0.0
    %491 = vmatpush2.msra.mxu0 0.0
    %492 = vmatprep.subr.mxu0 0.0
    %493 = vmatpush2.msra.mxu0 0.0
    %494 = vmatprep.subr.mxu0 0.0
    %495 = vmatpush2.msra.mxu0 0.0
    %496 = vmatprep.subr.mxu0 0.0
    %497 = vmatpush2.msra.mxu0 0.0
    %498 = vmatprep.subr.mxu0 0.0
    %499 = vmatpush2.msra.mxu0 0.0
    %500 = vmatprep.subr.mxu0 0.0
    %501 = vmatpush2.msra.mxu0 0.0
    %502 = vmatprep.subr.mxu0 0.0
    %503 = vmatpush2.msra.mxu0 0.0
    %504 = vmatprep.subr.mxu0 0.0
    %505 = vmatpush2.msra.mxu0 0.0
    %506 = vmatprep.mubr.f32.mxu0 0.0
    %507 = vmatmul.mubr.f32.gmra.mxu0 %v440
    %v508 = vpop.f32.mrf.mxu0
    %v509 = vadd.f32 %v437, %v508
    %v510 = vpop.f32.mrf.mxu0
    %511 = vdwg.mxu0
    %vm512 = vcmask 58368
    %v513 = vsel %vm512, %v429, 0.0
    %v514 = vrot.slane %v513, 4
    %v515 = vadd.f32 %v513, %v514
    %v516 = vrot.slane %v515, 2
    %v517 = vadd.f32 %v515, %v516
    %v518 = vrot.slane %v517, 1
    %v519 = vadd.f32 %v517, %v518
    %v520 = vmul.f32 %v519, %v302
    %v521 = vsel %vm51, %v509, 0.0
    %v522 = vrot.slane %v521, 4
    %v523 = vadd.f32 %v521, %v522
    %v524 = vrot.slane %v523, 2
    %v525 = vadd.f32 %v523, %v524
    %v526 = vrot.slane %v525, 1
    %v527 = vadd.f32 %v525, %v526
    %v528 = vmul.f32 %v527, %v312
    %v529 = vmul.f32 %v429, %v429
    %v530 = vsel %vm512, %v529, 0.0
    %v531 = vrot.slane %v530, 4
    %v532 = vadd.f32 %v530, %v531
    %v533 = vrot.slane %v532, 2
    %v534 = vadd.f32 %v532, %v533
    %v535 = vrot.slane %v534, 1
    %v536 = vadd.f32 %v534, %v535
    %v537 = vmul.f32 %v536, %v302
    %v538 = vmul.f32 %v520, %v520
    %v539 = vsub.f32 %v537, %v538
    %v540 = vmul.f32 %v509, %v509
    %v541 = vsel %vm51, %v540, 0.0
    %v542 = vrot.slane %v541, 4
    %v543 = vadd.f32 %v541, %v542
    %v544 = vrot.slane %v543, 2
    %v545 = vadd.f32 %v543, %v544
    %v546 = vrot.slane %v545, 1
    %v547 = vadd.f32 %v545, %v546
    %v548 = vmul.f32 %v547, %v312
    %v549 = vmul.f32 %v528, %v528
    %v550 = vsub.f32 %v548, %v549
    %v551 = vadd.f32 %v539, %v550
    %v552 = vadd.f32 %v551, 1e-05
    %v553 = vrsqrt.pop %v552
    %v554 = vld [vmem:[%s10] sm:$0x1]
    %v555 = vmul.f32 %v553, %v554
    %v556 = vlaneseq
    %v557 = vshrl.u32 %v556, 7
    %v558 = vsub.s32 0, %v557
    %v559 = vrot.slane %v555, %v558
    %v560 = vmul.f32 %v429, %v559
    %v561 = vadd.f32 %v520, %v528
    %v562 = vsub.f32 %v509, %v561
    %v563 = vmul.f32 %v562, %v559
    %v564 = vld [vmem:[%s11] sm:$0x1]
    %v566 = vlaneseq
    %v567 = vshrl.u32 %v566, 7
    %v568 = vsub.s32 0, %v567
    %v569 = vrot.slane %v564, %v568
    %v571 = vadd.f32 %v563, %v569
    %v572 = vld [vmem:[%s12] sm:$0x1]
    %v574 = vlaneseq
    %v575 = vshrl.u32 %v574, 7
    %v576 = vsub.s32 0, %v575
    %v577 = vrot.slane %v572, %v576
    %v579 = vmul.f32 %v560, %v577
    %v580 = vsel %vm512, %v579, 0.0
    %581 = vadd.xlane.f32.xlu0 %v580
    %v582 = vpop.xlane.xlu0 %581
    %v583 = vsel %vm51, %v572, 0
    %v586 = vsel %vm51, %v571, 0
    %588 = vmatprep.subr.mxu0 0.0
    %589 = vmatpush1.xpose.msra.mxu0 0.0
    %590 = vmatprep.subr.mxu0 0.0
    %591 = vmatpush1.xpose.msra.mxu0 0.0
    %592 = vmatprep.subr.mxu0 0.0
    %593 = vmatpush1.xpose.msra.mxu0 0.0
    %594 = vmatprep.subr.mxu0 0.0
    %595 = vmatpush1.xpose.msra.mxu0 0.0
    %596 = vmatprep.subr.mxu0 0.0
    %597 = vmatpush1.xpose.msra.mxu0 0.0
    %598 = vmatprep.subr.mxu0 0.0
    %599 = vmatpush1.xpose.msra.mxu0 0.0
    %600 = vmatprep.subr.mxu0 0.0
    %601 = vmatpush1.xpose.msra.mxu0 0.0
    %602 = vmatprep.subr.mxu0 0.0
    %603 = vmatpush1.xpose.msra.mxu0 0.0
    %604 = vmatprep.subr.mxu0 0.0
    %605 = vmatpush1.xpose.msra.mxu0 0.0
    %606 = vmatprep.subr.mxu0 0.0
    %607 = vmatpush1.xpose.msra.mxu0 0.0
    %608 = vmatprep.subr.mxu0 0.0
    %609 = vmatpush1.xpose.msra.mxu0 0.0
    %610 = vmatprep.subr.mxu0 0.0
    %611 = vmatpush1.xpose.msra.mxu0 0.0
    %612 = vmatprep.subr.mxu0 0.0
    %613 = vmatpush1.xpose.msra.mxu0 0.0
    %614 = vmatprep.subr.mxu0 0.0
    %615 = vmatpush1.xpose.msra.mxu0 0.0
    %616 = vmatprep.subr.mxu0 0.0
    %617 = vmatpush1.xpose.msra.mxu0 0.0
    %618 = vmatprep.subr.mxu0 0.0
    %619 = vmatpush1.xpose.msra.mxu0 %v586
    %620 = vmatprep.subr.mxu0 0.0
    %621 = vmatpush2.xpose.msra.mxu0 0.0
    %622 = vmatprep.subr.mxu0 0.0
    %623 = vmatpush2.xpose.msra.mxu0 0.0
    %624 = vmatprep.subr.mxu0 0.0
    %625 = vmatpush2.xpose.msra.mxu0 0.0
    %626 = vmatprep.subr.mxu0 0.0
    %627 = vmatpush2.xpose.msra.mxu0 0.0
    %628 = vmatprep.subr.mxu0 0.0
    %629 = vmatpush2.xpose.msra.mxu0 0.0
    %630 = vmatprep.subr.mxu0 0.0
    %631 = vmatpush2.xpose.msra.mxu0 0.0
    %632 = vmatprep.subr.mxu0 0.0
    %633 = vmatpush2.xpose.msra.mxu0 0.0
    %634 = vmatprep.subr.mxu0 0.0
    %635 = vmatpush2.xpose.msra.mxu0 0.0
    %636 = vmatprep.subr.mxu0 0.0
    %637 = vmatpush2.xpose.msra.mxu0 0.0
    %638 = vmatprep.subr.mxu0 0.0
    %639 = vmatpush2.xpose.msra.mxu0 0.0
    %640 = vmatprep.subr.mxu0 0.0
    %641 = vmatpush2.xpose.msra.mxu0 0.0
    %642 = vmatprep.subr.mxu0 0.0
    %643 = vmatpush2.xpose.msra.mxu0 0.0
    %644 = vmatprep.subr.mxu0 0.0
    %645 = vmatpush2.xpose.msra.mxu0 0.0
    %646 = vmatprep.subr.mxu0 0.0
    %647 = vmatpush2.xpose.msra.mxu0 0.0
    %648 = vmatprep.subr.mxu0 0.0
    %649 = vmatpush2.xpose.msra.mxu0 0.0
    %650 = vmatprep.subr.mxu0 0.0
    %651 = vmatpush2.xpose.msra.mxu0 0.0
    %652 = vmatprep.mubr.f32.mxu0 0.0
    %653 = vmatmul.mubr.f32.gmra.mxu0 %v583
    %v654 = vpop.f32.mrf.mxu0
    %v655 = vadd.f32 0.0, %v654
    %v656 = vpop.f32.mrf.mxu0
    %657 = vdwg.mxu0
    %v658 = vlaneseq
    %v659 = vshrl.u32 %v658, 7
    %v660 = vsub.s32 0, %v659
    %v661 = vrot.slane %v655, %v660
    %v662 = vadd.f32 %v582, %v661
    %v663 = vld [vmem:[#allocation2] sm:$0x1]
    %v665 = vlaneseq
    %v666 = vshrl.u32 %v665, 7
    %v667 = vsub.s32 0, %v666
    %v668 = vrot.slane %v663, %v667
    %669 = vset.pattern.permute.xlu0 0
    %670 = vperm.xlu0 %669, %v668
    %v671 = vpop.permute.xlu0 %670
    %v673 = vadd.f32 %v662, %v671
    %674 = vst.msk [vmem:[#allocation3] sm:$0x3] %vm512, %v673
    // Predicated region
    $region58: #{tpu_custom_call.1} parent=1 // pred_check
      _
    $region59: #{tpu_custom_call.1} parent=1 // pred_check_branch
      %676 = sbr.rel (0) target = $region61
    $region60: #{tpu_custom_call.1} parent=1 // pred_region
      %s678 = ssub.s32 32, 32
      %679 = vsyncadd [#allocation4], %s678
      %s681 = sshll.u32 [#allocation3], 4
      %s682 = int_to_ptr.vmem [resolvable:$true] %s681
      %684 = dma.vmem_to_hbm [thread:$0]  %s682, 32, %s14, [#allocation4]
    $region61: #{tpu_custom_call.1} parent=1 // pred_fallthru
      _
    // Predicated region
    $region62: #{tpu_custom_call.1} parent=1 // pred_check
      _
    $region63: #{tpu_custom_call.1} parent=1 // pred_check_branch
      %686 = sbr.rel (0) target = $region65
    $region64: #{tpu_custom_call.1} parent=1 // pred_region
      %687 = dma.done [#allocation4], 32
    $region65: #{tpu_custom_call.1} parent=1 // pred_fallthru
      _
    %688 = vsyncpa [#allocation4], 1

</llo_original>
